<compile_context>
chip_gen: v7x
topology: tpu7x:2x2x1
jax: 0.10.0
libtpu: 0.0.40
codegen_flags: <defaults>
</compile_context>

<pallas_src>
import jax
import jax.numpy as jnp
from jax.experimental import pallas as pl
from jax.experimental.pallas import tpu as pltpu


def _linreg_kernel(xt_ref, w_ref, b_ref, o_ref):
    """o[0, :] = sum_k w[k] * x_t[k, :] + b   (pure VPU, batch on lanes).

    xt_ref: VMEM (D_in, tb) -- X transposed, batch elements on the lane axis
    w_ref : SMEM (1, D_in)  -- weight column as scalars
    b_ref : SMEM (1, 1)     -- bias scalar
    o_ref : VMEM (1, tb)    -- lane-dense output row
    """
    d_in = w_ref.shape[1]
    tb = xt_ref.shape[1]
    acc = jnp.full((1, tb), b_ref[0, 0], dtype=jnp.float32)
    # Static unroll over the (small) feature dim: one scalar*vector
    # multiply-add per input feature.  This d2l model has num_inputs ~ 2;
    # for very large num_inputs an MXU / reduce formulation would be better.
    for k in range(d_in):
        acc = acc + w_ref[0, k] * xt_ref[k:k + 1, :].astype(jnp.float32)
    o_ref[...] = acc.astype(o_ref.dtype)


def _round_up(v, m):
    return (v + m - 1) // m * m


def _parallel_grid_steps():
    """2 on v7x (2 TensorCores/chip); 1 on single-TC chips (v5e/v6e)."""
    try:
        kind = jax.devices()[0].device_kind.lower()
    except Exception:
        return 1
    return 2 if "v7" in kind else 1


def linreg_forward(x, w, b):
    """y = x @ w + b  (w: (D_in, 1), b: (1,)) as a single Pallas TPU kernel."""
    B, D_in = x.shape
    assert w.shape == (D_in, 1)

    # Grid sizing: one big tile on 1-TC chips; two parallel tiles on v7x when
    # each core gets at least 128 lanes of batch.
    steps = _parallel_grid_steps()
    if steps > 1 and B >= 128 * steps:
        tb = _round_up(pl.cdiv(B, steps), 128)
        b_pad = tb * steps
    else:
        steps, tb, b_pad = 1, B, B          # block == full dim: no padding

    # Present X transposed (batch on the lane axis) in f32.  This is a tiny
    # (D_in * B)-element copy; there is no contraction/output padding.
    xt = jnp.transpose(x).astype(jnp.float32)
    if b_pad != B:                          # pad only the batch tail (rare)
        xt = jnp.zeros((D_in, b_pad), jnp.float32).at[:, :B].set(xt)

    w_smem = jnp.reshape(w, (1, D_in)).astype(jnp.float32)
    b_smem = jnp.reshape(b, (1, 1)).astype(jnp.float32)

    cost = pl.CostEstimate(                 # logical dims, not padded ones
        flops=2 * B * D_in,
        transcendentals=0,
        bytes_accessed=4 * (B * D_in + D_in + 1 + B),
    )

    y_row = pl.pallas_call(
        _linreg_kernel,
        out_shape=jax.ShapeDtypeStruct((1, b_pad), jnp.float32),
        grid_spec=pltpu.PrefetchScalarGridSpec(
            num_scalar_prefetch=0,
            grid=(steps,),
            in_specs=[
                pl.BlockSpec((D_in, tb), lambda i: (0, i)),          # X^T tile
                pl.BlockSpec((1, D_in), lambda i: (0, 0),
                             memory_space=pltpu.MemorySpace.SMEM),   # w scalars
                pl.BlockSpec((1, 1), lambda i: (0, 0),
                             memory_space=pltpu.MemorySpace.SMEM),   # b scalar
            ],
            out_specs=pl.BlockSpec((1, tb), lambda i: (0, i)),
        ),
        compiler_params=pltpu.CompilerParams(
            dimension_semantics=("parallel",)),
        cost_estimate=cost,
    )(xt, w_smem, b_smem)

    if b_pad != B:
        y_row = y_row[:, :B]
    return jnp.reshape(y_row, (B, 1))       # (1, B) -> (B, 1): same linear order


class PallasLinearRegressionScratch:
    """Pallas analogue of d2l LinearRegressionScratch (forward pass)."""

    def __init__(self, num_inputs, lr, sigma=0.01, seed=0):
        self.num_inputs = num_inputs
        self.lr = lr
        self.sigma = sigma
        key = jax.random.PRNGKey(seed)
        self.w = sigma * jax.random.normal(key, (num_inputs, 1), jnp.float32)
        self.b = jnp.zeros((1,), jnp.float32)

    def forward(self, X):
        return linreg_forward(X, self.w, self.b)

    __call__ = forward

    def loss(self, y_hat, y):
        # Plain-JAX scalar reduction (training utility, no kernel needed).
        return jnp.mean((y_hat - y) ** 2 / 2)

    # TODO(synk): SGD.step()/zero_grad() and configure_optimizers() are
    # host-side autograd training-loop utilities with no Pallas forward-pass
    # equivalent.


if __name__ == "__main__":
    key = jax.random.PRNGKey(0)
    B, num_inputs = 1024, 2
    x = jax.random.normal(key, (B, num_inputs), jnp.float32)

    model = PallasLinearRegressionScratch(num_inputs=num_inputs, lr=0.03, seed=0)
    y = jax.block_until_ready(model(x))

    # Reference check in plain JAX (same math as the PyTorch forward).
    y_ref = x @ model.w + model.b
    assert y.shape == (B, 1)
    assert jnp.allclose(y, y_ref, atol=1e-5, rtol=1e-5)

    # Ragged / unaligned shapes exercise the zero-padding, grid=(1,) path.
    x2 = jax.random.normal(jax.random.PRNGKey(1), (37, 3), jnp.float32)
    w2 = 0.01 * jax.random.normal(jax.random.PRNGKey(2), (3, 1), jnp.float32)
    b2 = jnp.ones((1,), jnp.float32)
    y2 = jax.block_until_ready(linreg_forward(x2, w2, b2))
    assert y2.shape == (37, 1)
    assert jnp.allclose(y2, x2 @ w2 + b2, atol=1e-5, rtol=1e-5)

    print("KERNEL_OK")
</pallas_src>

<mosaic_0001>
module attributes {stable_mosaic.version = 11 : i64} {
  func.func @_linreg_kernel(%arg0: i32, %arg1: memref<2x1024xf32, #tpu.memory_space<vmem>>, %arg2: memref<1x2xf32, #tpu.memory_space<smem>>, %arg3: memref<1x1xf32, #tpu.memory_space<smem>>, %arg4: memref<1x1024xf32, #tpu.memory_space<vmem>>) attributes {dimension_semantics = [#tpu.dimension_semantics<parallel>], iteration_bounds = array<i64: 1>, scalar_prefetch = 0 : i64, scratch_operands = 0 : i64, tpu.core_type = #tpu.core_type<tc>, window_params = [{transform_indices = @transform_0, window_bounds = array<i64: 2, 1024>}, {transform_indices = @transform_1, window_bounds = array<i64: 1, 2>}, {transform_indices = @transform_2, window_bounds = array<i64: 1, 1>}, {transform_indices = @transform_3, window_bounds = array<i64: 1, 1024>}]} {
    %c0 = arith.constant 0 : index
    %c0_0 = arith.constant 0 : index
    %0 = memref.load %arg3[%c0, %c0_0] : memref<1x1xf32, #tpu.memory_space<smem>>
    %1 = vector.broadcast %0 : f32 to vector<1x1024xf32>
    %c0_1 = arith.constant 0 : index
    %c0_2 = arith.constant 0 : index
    %2 = memref.load %arg2[%c0_1, %c0_2] : memref<1x2xf32, #tpu.memory_space<smem>>
    %c0_3 = arith.constant 0 : index
    %c0_4 = arith.constant 0 : index
    %3 = vector.load %arg1[%c0_3, %c0_4] : memref<2x1024xf32, #tpu.memory_space<vmem>>, vector<1x1024xf32>
    %4 = vector.broadcast %2 : f32 to vector<1x1024xf32>
    %5 = arith.mulf %4, %3 : vector<1x1024xf32>
    %6 = arith.addf %1, %5 : vector<1x1024xf32>
    %c0_5 = arith.constant 0 : index
    %c1 = arith.constant 1 : index
    %7 = memref.load %arg2[%c0_5, %c1] : memref<1x2xf32, #tpu.memory_space<smem>>
    %c1_6 = arith.constant 1 : index
    %c0_7 = arith.constant 0 : index
    %8 = vector.load %arg1[%c1_6, %c0_7] : memref<2x1024xf32, #tpu.memory_space<vmem>>, vector<1x1024xf32>
    %9 = vector.broadcast %7 : f32 to vector<1x1024xf32>
    %10 = arith.mulf %9, %8 : vector<1x1024xf32>
    %11 = arith.addf %6, %10 : vector<1x1024xf32>
    %c0_8 = arith.constant 0 : index
    %c0_9 = arith.constant 0 : index
    %12 = vector.load %arg4[%c0_8, %c0_9] : memref<1x1024xf32, #tpu.memory_space<vmem>>, vector<1x1024xf32>
    tpu.vector_store %arg4[%c0_8, %c0_9], %11 {strides = array<i32>} : memref<1x1024xf32, #tpu.memory_space<vmem>>, vector<1x1024xf32>,
    return
  }
  func.func @transform_0(%arg0: i32) -> (i32, i32) {
    %c0_i32 = arith.constant 0 : i32
    %c0_i32_0 = arith.constant 0 : i32
    return %c0_i32, %arg0 : i32, i32
  }
  func.func @transform_1(%arg0: i32) -> (i32, i32) {
    %c0_i32 = arith.constant 0 : i32
    %c0_i32_0 = arith.constant 0 : i32
    %c0_i32_1 = arith.constant 0 : i32
    return %c0_i32, %c0_i32_0 : i32, i32
  }
  func.func @transform_2(%arg0: i32) -> (i32, i32) {
    %c0_i32 = arith.constant 0 : i32
    %c0_i32_0 = arith.constant 0 : i32
    %c0_i32_1 = arith.constant 0 : i32
    return %c0_i32, %c0_i32_0 : i32, i32
  }
  func.func @transform_3(%arg0: i32) -> (i32, i32) {
    %c0_i32 = arith.constant 0 : i32
    %c0_i32_0 = arith.constant 0 : i32
    return %c0_i32, %arg0 : i32, i32
  }
}

</mosaic_0001>

<llo_original>
// kernel: tpu_custom_call.1
$region0: #{tpu_custom_call.1}
  #allocation0 [shape = 'u32[]', space=smem, size = 0x4, offset = 0x4, fixed_abs, tag = 'smem constant byte address 0x4 - core index']
  #allocation1 [shape = 'u32[144,128]{1,0:T(1,128)}', space=vmem, size = 0x12000, scoped, tag = 'internal scratch']
  #allocation2 [shape = 'f32[1,1]{1,0:T(1,128)S(6)}', space=smem, size = 0x200, scoped, tag = 'scoped memory for tpu_custom_call.1']
  %s0 = inlined_call_operand.hbm [shape: f32[2,1024], index: 0, kind: input, shape index: {}]
  %s1 = inlined_call_operand.vmem [shape: f32[1,2], index: 1, kind: input, shape index: {}]
  %s2 = inlined_call_operand.<no memory space> [shape: f32[1,1], index: 2, kind: input, shape index: {}]
  %s3 = inlined_call_operand.hbm [shape: f32[1,1024], index: 3, kind: output, shape index: {}]
  %s4 = sld [smem:[#allocation0]]
  $region30: #{tpu_custom_call.1} parent=0
    _
  %s6 = ssub.s32 1, %s4
  %s7 = scalar_select 0, %s6, %s4
  %8 = sst [smem:[#allocation2]] %s2
  $region1: #{tpu_custom_call.1} parent=0
    #allocation3 [shape = 'u8[8192]{0}', space=vmem, size = 0x2000, scoped, tag = 'input window, operand 0, single buffered']
    #allocation4 [shape = 's32[1]{0}', space=sflag, size = 0x4, scoped, tag = 'scoped memory for tpu_custom_call.1']
    #allocation5 [shape = 's32[1]{0}', space=sflag, size = 0x4, scoped, tag = 'scoped memory for tpu_custom_call.1']
    #allocation6 [shape = 's32[1]{0}', space=sflag, size = 0x4, scoped, tag = 'scoped memory for tpu_custom_call.1']
    #allocation7 [shape = 'u8[512]{0}', space=smem, size = 0x200, scoped, tag = 'input window, operand 1, single buffered']
    #allocation8 [shape = 'u8[4096]{0}', space=vmem, size = 0x1000, scoped, tag = 'output window, operand 0, single buffered']
    %9 = vsyncpa [#allocation4], 0
    %10 = vsyncpa [#allocation6], 0
    %11 = vsyncpa [#allocation5], 0
    // Predicated region
    $region2: #{tpu_custom_call.1} parent=1 // pred_check
      _
    $region3: #{tpu_custom_call.1} parent=1 // pred_check_branch
      %13 = sbr.rel (0) target = $region5
    $region4: #{tpu_custom_call.1} parent=1 // pred_region
      %s15 = ssub.s32 256, 256
      %16 = vsyncadd [#allocation4], %s15
      %s18 = sshll.u32 [#allocation3], 4
      %s19 = int_to_ptr.vmem [resolvable:$true] %s18
      %21 = dma.hbm_to_vmem [thread:$0]  %s0, 256, %s19, [#allocation4]
    $region5: #{tpu_custom_call.1} parent=1 // pred_fallthru
      _
    // Predicated region
    $region6: #{tpu_custom_call.1} parent=1 // pred_check
      _
    $region7: #{tpu_custom_call.1} parent=1 // pred_check_branch
      %23 = sbr.rel (0) target = $region9
    $region8: #{tpu_custom_call.1} parent=1 // pred_region
      %s25 = ssub.s32 16, 16
      %26 = vsyncadd [#allocation6], %s25
      %s28 = sshll.u32 %s1, 4
      %s29 = int_to_ptr.vmem [resolvable:$true] %s28
      %31 = dma.vmem_to_smem %s29, 16, [#allocation7], [#allocation6]
    $region9: #{tpu_custom_call.1} parent=1 // pred_fallthru
      _
    // Predicated region
    $region10: #{tpu_custom_call.1} parent=1 // pred_check
      _
    $region11: #{tpu_custom_call.1} parent=1 // pred_check_branch
      %33 = sbr.rel (0) target = $region13
    $region12: #{tpu_custom_call.1} parent=1 // pred_region
      _
    $region13: #{tpu_custom_call.1} parent=1 // pred_fallthru
      _
    // Predicated region
    $region14: #{tpu_custom_call.1} parent=1 // pred_check
      _
    $region15: #{tpu_custom_call.1} parent=1 // pred_check_branch
      %35 = sbr.rel (0) target = $region17
    $region16: #{tpu_custom_call.1} parent=1 // pred_region
      %36 = dma.done [#allocation4], 256
    $region17: #{tpu_custom_call.1} parent=1 // pred_fallthru
      _
    // Predicated region
    $region18: #{tpu_custom_call.1} parent=1 // pred_check
      _
    $region19: #{tpu_custom_call.1} parent=1 // pred_check_branch
      %38 = sbr.rel (0) target = $region21
    $region20: #{tpu_custom_call.1} parent=1 // pred_region
      %39 = dma.done [#allocation6], 16
    $region21: #{tpu_custom_call.1} parent=1 // pred_fallthru
      _
    %40 = sfence
    %s41 = sld [smem:[#allocation2]]
    %v42 = vstv %s41
    %s43 = sld [smem:[#allocation7]]
    %v44 = vld [vmem:[#allocation3] ss:$2 sm:$0xff]
    %v45 = vstv %s43
    %v46 = vmul.f32 %v45, %v44
    %v47 = vadd.f32 %v42, %v46
    %s48 = sld [smem:[#allocation7 + $0x1]]
    %s49 = scalar_lea.vmem [#allocation3], 1
    %v50 = vld [vmem:[%s49] ss:$2 sm:$0xff]
    %v51 = vstv %s48
    %v52 = vmul.f32 %v51, %v50
    %v53 = vadd.f32 %v47, %v52
    %54 = vst [vmem:[#allocation8] sm:$0xff] %v53
    // Predicated region
    $region22: #{tpu_custom_call.1} parent=1 // pred_check
      _
    $region23: #{tpu_custom_call.1} parent=1 // pred_check_branch
      %56 = sbr.rel (0) target = $region25
    $region24: #{tpu_custom_call.1} parent=1 // pred_region
      %s58 = ssub.s32 128, 128
      %59 = vsyncadd [#allocation5], %s58
      %s61 = sshll.u32 [#allocation8], 4
      %s62 = int_to_ptr.vmem [resolvable:$true] %s61
      %64 = dma.vmem_to_hbm [thread:$0]  %s62, 128, %s3, [#allocation5]
    $region25: #{tpu_custom_call.1} parent=1 // pred_fallthru
      _
    // Predicated region
    $region26: #{tpu_custom_call.1} parent=1 // pred_check
      _
    $region27: #{tpu_custom_call.1} parent=1 // pred_check_branch
      %66 = sbr.rel (0) target = $region29
    $region28: #{tpu_custom_call.1} parent=1 // pred_region
      %67 = dma.done [#allocation5], 128
    $region29: #{tpu_custom_call.1} parent=1 // pred_fallthru
      _
    %68 = vsyncpa [#allocation4], 1
    %69 = vsyncpa [#allocation5], 1
    %70 = vsyncpa [#allocation6], 1

</llo_original>
